<compile_context>
chip_gen: v7x
topology: tpu7x:2x2x1
jax: 0.10.0
libtpu: 0.0.40
codegen_flags: <defaults>
</compile_context>

<pallas_src>
import functools

import jax
import jax.numpy as jnp
from jax import lax
from jax.experimental import pallas as pl
from jax.experimental.pallas import tpu as pltpu

_MIB = 1024 * 1024


def _vmem_capacity_bytes():
    """Physical VMEM of this TPU generation; conservative 64 MiB fallback."""
    try:
        info = pltpu.get_tpu_info()
        cap = getattr(info, "vmem_capacity_bytes", None)
        if cap:
            return int(cap)
    except Exception:
        pass
    return 64 * _MIB  # v7x per-TensorCore VMEM (smallest modern value -> safe)


def _sublane_align(dtype):
    # Native sublane packing: f32 -> 8, bf16 -> 16, int8/fp8 -> 32.
    return 8 * max(1, 4 // jnp.dtype(dtype).itemsize)


def _round_tile(dim, target, align):
    if dim <= target:
        return dim  # full extent: (8,128) block rule trivially satisfied
    return max((target // align) * align, align)


def _pick_tiles(M, N, K, x_dtype, vmem_cap):
    """Generation-aware tile selection (returns tm, tn, tk)."""
    big_vmem = vmem_cap >= 96 * _MIB  # v5e / v6e have 128 MiB; v7x has 64 MiB/TC
    m_align = _sublane_align(x_dtype)

    if big_vmem:
        tm_t, tn_t, tk_t = 1024, 1024, 1024
    else:
        tm_t, tn_t, tk_t = 512, 512, 1024  # budget-capped for 64 MiB VMEM

    # Small-batch (weight-streaming) regime: whole M fits in one tile.  Grow
    # the weight tile along K (~4-8 MiB per step) to amortize the ~0.35us
    # per-grid-step overhead against the dominant weight DMA.
    small_m = M <= tm_t
    if small_m:
        tk_t = 2048
        if big_vmem:
            tn_t = 1024

    tm = _round_tile(M, tm_t, m_align)
    tn = _round_tile(N, tn_t, 128)
    tk = _round_tile(K, tk_t, 128)

    # v7x has 2 TensorCores; "parallel" grid axes are sharded across them.
    # With a single M block, make sure the N axis has >= 2 blocks.
    if (not big_vmem) and small_m and N >= 256:
        half = max(128, ((N // 2) // 128) * 128)
        tn = min(tn, half)

    return tm, tn, tk


def _make_kernel(use_bias, acc_in_out, k_rem, tk, mxu_dtype):
    """Build the matmul kernel for a given (static) configuration."""

    def kernel(*refs):
        if use_bias and not acc_in_out:
            x_ref, w_ref, b_ref, o_ref, acc_ref = refs
        elif use_bias and acc_in_out:
            x_ref, w_ref, b_ref, o_ref = refs
            acc_ref = o_ref
        elif (not use_bias) and (not acc_in_out):
            x_ref, w_ref, o_ref, acc_ref = refs
        else:
            x_ref, w_ref, o_ref = refs
            acc_ref = o_ref

        k = pl.program_id(2)
        nk = pl.num_programs(2)

        @pl.when(k == 0)
        def _():
            acc_ref[...] = jnp.zeros_like(acc_ref)

        x = x_ref[...]
        w = w_ref[...]

        # K-tail masking: the padded part of the last K block is stale VMEM
        # (reused double buffers); zero it so it never reaches the accumulator.
        if k_rem:
            valid = jnp.where(k == nk - 1, k_rem, tk)
            xcol = lax.broadcasted_iota(jnp.int32, x.shape, 1)
            wcol = lax.broadcasted_iota(jnp.int32, w.shape, 1)
            x = jnp.where(xcol < valid, x, jnp.zeros_like(x))
            w = jnp.where(wcol < valid, w, jnp.zeros_like(w))

        # Feed the MXU a fast dtype (bf16 by default); accumulate in f32.
        if mxu_dtype is not None and x.dtype != jnp.dtype(mxu_dtype):
            x = x.astype(mxu_dtype)
            w = w.astype(mxu_dtype)

        # (tm, tk) x (tn, tk) -> (tm, tn), contracting K of both operands.
        acc_ref[...] += lax.dot_general(
            x, w,
            dimension_numbers=(((1,), (1,)), ((), ())),
            preferred_element_type=jnp.float32,
        )

        if use_bias or not acc_in_out:
            @pl.when(k == nk - 1)
            def _():
                out = acc_ref[...]
                if use_bias:
                    out = out + b_ref[...].astype(jnp.float32)
                o_ref[...] = out.astype(o_ref.dtype)

    return kernel


@functools.partial(jax.jit, static_argnames=("use_bias", "mxu_dtype"))
def linear_forward(x, weight, bias=None, *, use_bias=True, mxu_dtype=jnp.bfloat16):
    """Pallas equivalent of torch.nn.Linear(in_dim, out_dim, bias).

    x:      (..., in_dim)
    weight: (out_dim, in_dim)   -- PyTorch convention, not transposed here
    bias:   (out_dim,) or None
    mxu_dtype: dtype the MXU is fed (bf16 default, f32 accumulate);
               None -> keep the input dtype (exact f32 path).
    """
    if use_bias:
        assert bias is not None, "use_bias=True requires a bias array"

    K = x.shape[-1]
    lead_shape = x.shape[:-1]
    x2 = x.reshape(-1, K)
    M = x2.shape[0]
    N, K2 = weight.shape
    assert K == K2, "in_dimension mismatch"
    out_dtype = x.dtype

    # Lane-dense output: pad out_dim up to 128 when smaller (avoids masked
    # vst.msk partial stores); sliced back after the call.
    N_pad = N
    if N < 128:
        N_pad = 128
        weight = jnp.pad(weight, ((0, N_pad - N), (0, 0)))
        if use_bias:
            bias = jnp.pad(bias, (0, N_pad - N))

    vmem_cap = _vmem_capacity_bytes()
    tm, tn, tk = _pick_tiles(M, N_pad, K, x.dtype, vmem_cap)
    k_rem = K % tk

    acc_in_out = jnp.dtype(out_dtype) == jnp.dtype(jnp.float32)

    grid = (pl.cdiv(M, tm), pl.cdiv(N_pad, tn), pl.cdiv(K, tk))

    x_spec = pl.BlockSpec((tm, tk), lambda i, j, k: (i, k))
    w_spec = pl.BlockSpec((tn, tk), lambda i, j, k: (j, k))   # weight kept (N, K)
    o_spec = pl.BlockSpec((tm, tn), lambda i, j, k: (i, j))   # resident across k

    in_specs = [x_spec, w_spec]
    args = [x2, weight]
    if use_bias:
        in_specs.append(pl.BlockSpec((1, tn), lambda i, j, k: (0, j)))
        args.append(bias.reshape(1, N_pad))

    scratch = [] if acc_in_out else [pltpu.VMEM((tm, tn), jnp.float32)]

    # VMEM budgeting (double-buffered inputs/outputs + accumulator), capped by
    # the generation's physical capacity so v7x tuning can't silently OOM.
    x_it = jnp.dtype(x.dtype).itemsize
    w_it = jnp.dtype(weight.dtype).itemsize
    o_it = jnp.dtype(out_dtype).itemsize
    footprint = 2 * tm * tk * x_it + 2 * tn * tk * w_it + 2 * tm * tn * o_it
    if not acc_in_out:
        footprint += tm * tn * 4
    vmem_limit = int(min(vmem_cap * 3 // 4,
                         max(footprint + 16 * _MIB, 40 * _MIB)))

    cost = pl.CostEstimate(
        flops=2 * M * N_pad * K,
        transcendentals=0,
        bytes_accessed=(M * K * x_it + N_pad * K * w_it + M * N_pad * o_it
                        + (N_pad * 4 if use_bias else 0)),
    )

    kernel = _make_kernel(use_bias, acc_in_out, k_rem, tk, mxu_dtype)

    out = pl.pallas_call(
        kernel,
        out_shape=jax.ShapeDtypeStruct((M, N_pad), out_dtype),
        grid_spec=pltpu.PrefetchScalarGridSpec(
            num_scalar_prefetch=0,
            grid=grid,
            in_specs=in_specs,
            out_specs=o_spec,
            scratch_shapes=scratch,
        ),
        compiler_params=pltpu.CompilerParams(
            dimension_semantics=("parallel", "parallel", "arbitrary"),
            vmem_limit_bytes=vmem_limit,
        ),
        cost_estimate=cost,
    )(*args)

    if N_pad != N:
        out = out[:, :N]
    return out.reshape(lead_shape + (N,))


if __name__ == "__main__":
    # Small shapes consistent with the module: batch=8, in_dim=32, out_dim=64
    batch, in_dim, out_dim = 8, 32, 64

    key = jax.random.PRNGKey(0)
    kx, kw, kb = jax.random.split(key, 3)

    x = jax.random.normal(kx, (batch, in_dim), dtype=jnp.float32)
    # Deterministic stand-in for initializer.default_weight_init /
    # default_bias_init: uniform in [-1/sqrt(in_dim), 1/sqrt(in_dim)].
    bound = float(in_dim) ** -0.5
    weight = jax.random.uniform(kw, (out_dim, in_dim), dtype=jnp.float32,
                                minval=-bound, maxval=bound)
    bias = jax.random.uniform(kb, (out_dim,), dtype=jnp.float32,
                              minval=-bound, maxval=bound)

    y_ref = x @ weight.T + bias

    # Exact f32-MXU path (tight tolerance).
    y32 = jax.block_until_ready(
        linear_forward(x, weight, bias, use_bias=True, mxu_dtype=None))
    assert y32.shape == (batch, out_dim)
    assert jnp.allclose(y32, y_ref, atol=1e-5, rtol=1e-5), "mismatch (f32 path)"

    # Default fast path: bf16 MXU feed, f32 accumulate.
    y16 = jax.block_until_ready(linear_forward(x, weight, bias, use_bias=True))
    assert jnp.allclose(y16, y_ref, atol=3e-2, rtol=3e-2), "mismatch (bf16 path)"

    # No-bias path.
    y_nb = jax.block_until_ready(
        linear_forward(x, weight, use_bias=False, mxu_dtype=None))
    assert jnp.allclose(y_nb, x @ weight.T, atol=1e-5, rtol=1e-5), "mismatch (no bias)"

    # bf16 input/output path (exercises the f32 scratch accumulator branch).
    y_bf = jax.block_until_ready(
        linear_forward(x.astype(jnp.bfloat16), weight.astype(jnp.bfloat16),
                       use_bias=False))
    assert jnp.allclose(y_bf.astype(jnp.float32), x @ weight.T,
                        atol=5e-2, rtol=5e-2), "mismatch (bf16 io)"

    # K-tail masking path: in_dim not a multiple of the K tile (tk=2048 here).
    in_dim2 = 2050
    bound2 = float(in_dim2) ** -0.5
    x2 = jax.random.normal(kx, (batch, in_dim2), dtype=jnp.float32)
    w2 = jax.random.uniform(kw, (out_dim, in_dim2), dtype=jnp.float32,
                            minval=-bound2, maxval=bound2)
    y_tail = jax.block_until_ready(
        linear_forward(x2, w2, use_bias=False, mxu_dtype=None))
    assert jnp.allclose(y_tail, x2 @ w2.T, atol=2e-3, rtol=2e-3), "mismatch (K tail)"

    print("KERNEL_OK")
</pallas_src>

<mosaic_0001>
module attributes {stable_mosaic.version = 11 : i64} {
  func.func @kernel(%arg0: i32, %arg1: i32, %arg2: i32, %arg3: memref<8x32xf32, #tpu.memory_space<vmem>>, %arg4: memref<128x32xf32, #tpu.memory_space<vmem>>, %arg5: memref<1x128xf32, #tpu.memory_space<vmem>>, %arg6: memref<8x128xf32, #tpu.memory_space<vmem>>) attributes {dimension_semantics = [#tpu.dimension_semantics<parallel>, #tpu.dimension_semantics<parallel>, #tpu.dimension_semantics<arbitrary>], iteration_bounds = array<i64: 1, 1, 1>, scalar_prefetch = 0 : i64, scratch_operands = 0 : i64, tpu.core_type = #tpu.core_type<tc>, window_params = [{transform_indices = @transform_0, window_bounds = array<i64: 8, 32>}, {transform_indices = @transform_1, window_bounds = array<i64: 128, 32>}, {transform_indices = @transform_2, window_bounds = array<i64: 1, 128>}, {transform_indices = @transform_3, window_bounds = array<i64: 8, 128>}]} {
    %c0_i32 = arith.constant 0 : i32
    %0 = arith.cmpi eq, %arg2, %c0_i32 : i32
    %1 = arith.extui %0 : i1 to i32
    %c0_i32_0 = arith.constant 0 : i32
    %2 = arith.cmpi ne, %1, %c0_i32_0 : i32
    scf.if %2 {
      %cst_10 = arith.constant 0.000000e+00 : f32
      %12 = vector.broadcast %cst_10 : f32 to vector<8x128xf32>
      %c0_11 = arith.constant 0 : index
      %c0_12 = arith.constant 0 : index
      %13 = vector.load %arg6[%c0_11, %c0_12] : memref<8x128xf32, #tpu.memory_space<vmem>>, vector<8x128xf32>
      tpu.vector_store %arg6[%c0_11, %c0_12], %12 {strides = array<i32>} : memref<8x128xf32, #tpu.memory_space<vmem>>, vector<8x128xf32>,
    } else {
    }
    %c0 = arith.constant 0 : index
    %c0_1 = arith.constant 0 : index
    %3 = vector.load %arg3[%c0, %c0_1] : memref<8x32xf32, #tpu.memory_space<vmem>>, vector<8x32xf32>
    %c0_2 = arith.constant 0 : index
    %c0_3 = arith.constant 0 : index
    %4 = vector.load %arg4[%c0_2, %c0_3] : memref<128x32xf32, #tpu.memory_space<vmem>>, vector<128x32xf32>
    %c0_4 = arith.constant 0 : index
    %c0_5 = arith.constant 0 : index
    %5 = vector.load %arg6[%c0_4, %c0_5] : memref<8x128xf32, #tpu.memory_space<vmem>>, vector<8x128xf32>
    %cst = arith.constant dense<0.000000e+00> : vector<8x128xf32>
    %6 = tpu.matmul %3, %4, %cst {dimension_numbers = #tpu.dot_dimension_numbers<[1], [1], [0], [0], [0, 0, 1, 0], [], []>} : vector<8x32xf32>, vector<128x32xf32>, vector<8x128xf32> -> vector<8x128xf32>
    %7 = arith.addf %5, %6 : vector<8x128xf32>
    %c0_6 = arith.constant 0 : index
    %c0_7 = arith.constant 0 : index
    %8 = vector.load %arg6[%c0_6, %c0_7] : memref<8x128xf32, #tpu.memory_space<vmem>>, vector<8x128xf32>
    tpu.vector_store %arg6[%c0_6, %c0_7], %7 {strides = array<i32>} : memref<8x128xf32, #tpu.memory_space<vmem>>, vector<8x128xf32>,
    %c0_i32_8 = arith.constant 0 : i32
    %9 = arith.cmpi eq, %arg2, %c0_i32_8 : i32
    %10 = arith.extui %9 : i1 to i32
    %c0_i32_9 = arith.constant 0 : i32
    %11 = arith.cmpi ne, %10, %c0_i32_9 : i32
    scf.if %11 {
      %c0_10 = arith.constant 0 : index
      %c0_11 = arith.constant 0 : index
      %12 = vector.load %arg6[%c0_10, %c0_11] : memref<8x128xf32, #tpu.memory_space<vmem>>, vector<8x128xf32>
      %c0_12 = arith.constant 0 : index
      %c0_13 = arith.constant 0 : index
      %13 = vector.load %arg5[%c0_12, %c0_13] : memref<1x128xf32, #tpu.memory_space<vmem>>, vector<1x128xf32>
      %14 = vector.broadcast %13 : vector<1x128xf32> to vector<8x128xf32>
      %15 = arith.addf %12, %14 : vector<8x128xf32>
      %c0_14 = arith.constant 0 : index
      %c0_15 = arith.constant 0 : index
      %16 = vector.load %arg6[%c0_14, %c0_15] : memref<8x128xf32, #tpu.memory_space<vmem>>, vector<8x128xf32>
      tpu.vector_store %arg6[%c0_14, %c0_15], %15 {strides = array<i32>} : memref<8x128xf32, #tpu.memory_space<vmem>>, vector<8x128xf32>,
    } else {
    }
    return
  }
  func.func @transform_0(%arg0: i32, %arg1: i32, %arg2: i32) -> (i32, i32) {
    %c0_i32 = arith.constant 0 : i32
    return %arg0, %arg2 : i32, i32
  }
  func.func @transform_1(%arg0: i32, %arg1: i32, %arg2: i32) -> (i32, i32) {
    %c0_i32 = arith.constant 0 : i32
    return %arg1, %arg2 : i32, i32
  }
  func.func @transform_2(%arg0: i32, %arg1: i32, %arg2: i32) -> (i32, i32) {
    %c0_i32 = arith.constant 0 : i32
    %c0_i32_0 = arith.constant 0 : i32
    return %c0_i32, %arg1 : i32, i32
  }
  func.func @transform_3(%arg0: i32, %arg1: i32, %arg2: i32) -> (i32, i32) {
    %c0_i32 = arith.constant 0 : i32
    return %arg0, %arg1 : i32, i32
  }
}

</mosaic_0001>

<llo_original>
// kernel: linear_forward.1
$region0: #{linear_forward.1}
  #allocation0 [shape = 'u32[]', space=smem, size = 0x4, offset = 0x4, fixed_abs, tag = 'smem constant byte address 0x4 - core index']
  #allocation1 [shape = 'u32[144,128]{1,0:T(1,128)}', space=vmem, size = 0x12000, scoped, tag = 'internal scratch']
  %s0 = inlined_call_operand.vmem [shape: f32[8,32], index: 0, kind: input, shape index: {}]
  %s1 = inlined_call_operand.vmem [shape: f32[128,32], index: 1, kind: input, shape index: {}]
  %s2 = inlined_call_operand.vmem [shape: f32[1,128], index: 2, kind: input, shape index: {}]
  %s3 = inlined_call_operand.hbm [shape: f32[8,128], index: 3, kind: output, shape index: {}]
  %s4 = sld [smem:[#allocation0]]
  $region30: #{linear_forward.1} parent=0
    _
  %s6 = ssub.s32 1, %s4
  %s7 = scalar_select 0, %s6, %s4
  $region1: #{linear_forward.1} parent=0
    #allocation2 [shape = 'u8[4096]{0}', space=vmem, size = 0x1000, scoped, tag = 'output window, operand 0, single buffered']
    #allocation3 [shape = 's32[1]{0}', space=sflag, size = 0x4, scoped, tag = 'scoped memory for linear_forward.1']
    %8 = vsyncpa [#allocation3], 0
    // Predicated region
    $region2: #{linear_forward.1} parent=1 // pred_check
      _
    $region3: #{linear_forward.1} parent=1 // pred_check_branch
      %10 = sbr.rel (0) target = $region5
    $region4: #{linear_forward.1} parent=1 // pred_region
      _
    $region5: #{linear_forward.1} parent=1 // pred_fallthru
      _
    // Predicated region
    $region6: #{linear_forward.1} parent=1 // pred_check
      _
    $region7: #{linear_forward.1} parent=1 // pred_check_branch
      %12 = sbr.rel (0) target = $region9
    $region8: #{linear_forward.1} parent=1 // pred_region
      _
    $region9: #{linear_forward.1} parent=1 // pred_fallthru
      _
    // Predicated region
    $region10: #{linear_forward.1} parent=1 // pred_check
      _
    $region11: #{linear_forward.1} parent=1 // pred_check_branch
      %14 = sbr.rel (0) target = $region13
    $region12: #{linear_forward.1} parent=1 // pred_region
      _
    $region13: #{linear_forward.1} parent=1 // pred_fallthru
      _
    %p15 = scmp.eq.s32.totalorder 0, 0
    // Predicated region
    $region14: #{linear_forward.1} parent=1 // pred_check
      %p16 = pneg %p15
    $region15: #{linear_forward.1} parent=1 // pred_check_branch
      %18 = sbr.rel (%p16) target = $region17
    $region16: #{linear_forward.1} parent=1 // pred_region
      %19 = vst [vmem:[#allocation2] sm:$0xff] 0.0
    $region17: #{linear_forward.1} parent=1 // pred_fallthru
      _
    %v20 = vld [vmem:[%s0] sm:$0xff]
    %v21 = vld [vmem:[%s1] sm:$0xff]
    %v22 = vld [vmem:[%s1 + $0x8] sm:$0xff]
    %v23 = vld [vmem:[%s1 + $0x10] sm:$0xff]
    %v24 = vld [vmem:[%s1 + $0x18] sm:$0xff]
    %v25 = vld [vmem:[%s1 + $0x20] sm:$0xff]
    %v26 = vld [vmem:[%s1 + $0x28] sm:$0xff]
    %v27 = vld [vmem:[%s1 + $0x30] sm:$0xff]
    %v28 = vld [vmem:[%s1 + $0x38] sm:$0xff]
    %v29 = vld [vmem:[%s1 + $0x40] sm:$0xff]
    %v30 = vld [vmem:[%s1 + $0x48] sm:$0xff]
    %v31 = vld [vmem:[%s1 + $0x50] sm:$0xff]
    %v32 = vld [vmem:[%s1 + $0x58] sm:$0xff]
    %v33 = vld [vmem:[%s1 + $0x60] sm:$0xff]
    %v34 = vld [vmem:[%s1 + $0x68] sm:$0xff]
    %v35 = vld [vmem:[%s1 + $0x70] sm:$0xff]
    %v36 = vld [vmem:[%s1 + $0x78] sm:$0xff]
    %v37 = vld [vmem:[#allocation2] sm:$0xff]
    %vm38 = vcmask 261120
    %v40 = vsel %vm38, %v20, 0
    %v43 = vsel %vm38, %v21, 0
    %v46 = vsel %vm38, %v22, 0
    %v49 = vsel %vm38, %v23, 0
    %v52 = vsel %vm38, %v24, 0
    %v55 = vsel %vm38, %v25, 0
    %v58 = vsel %vm38, %v26, 0
    %v61 = vsel %vm38, %v27, 0
    %v64 = vsel %vm38, %v28, 0
    %v67 = vsel %vm38, %v29, 0
    %v70 = vsel %vm38, %v30, 0
    %v73 = vsel %vm38, %v31, 0
    %v76 = vsel %vm38, %v32, 0
    %v79 = vsel %vm38, %v33, 0
    %v82 = vsel %vm38, %v34, 0
    %v85 = vsel %vm38, %v35, 0
    %v88 = vsel %vm38, %v36, 0
    %90 = vmatprep.subr.mxu0 0.0
    %91 = vmatpush1.xpose.msra.mxu0 %v43
    %92 = vmatprep.subr.mxu0 0.0
    %93 = vmatpush1.xpose.msra.mxu0 %v46
    %94 = vmatprep.subr.mxu0 0.0
    %95 = vmatpush1.xpose.msra.mxu0 %v49
    %96 = vmatprep.subr.mxu0 0.0
    %97 = vmatpush1.xpose.msra.mxu0 %v52
    %98 = vmatprep.subr.mxu0 0.0
    %99 = vmatpush1.xpose.msra.mxu0 %v55
    %100 = vmatprep.subr.mxu0 0.0
    %101 = vmatpush1.xpose.msra.mxu0 %v58
    %102 = vmatprep.subr.mxu0 0.0
    %103 = vmatpush1.xpose.msra.mxu0 %v61
    %104 = vmatprep.subr.mxu0 0.0
    %105 = vmatpush1.xpose.msra.mxu0 %v64
    %106 = vmatprep.subr.mxu0 0.0
    %107 = vmatpush1.xpose.msra.mxu0 %v67
    %108 = vmatprep.subr.mxu0 0.0
    %109 = vmatpush1.xpose.msra.mxu0 %v70
    %110 = vmatprep.subr.mxu0 0.0
    %111 = vmatpush1.xpose.msra.mxu0 %v73
    %112 = vmatprep.subr.mxu0 0.0
    %113 = vmatpush1.xpose.msra.mxu0 %v76
    %114 = vmatprep.subr.mxu0 0.0
    %115 = vmatpush1.xpose.msra.mxu0 %v79
    %116 = vmatprep.subr.mxu0 0.0
    %117 = vmatpush1.xpose.msra.mxu0 %v82
    %118 = vmatprep.subr.mxu0 0.0
    %119 = vmatpush1.xpose.msra.mxu0 %v85
    %120 = vmatprep.subr.mxu0 0.0
    %121 = vmatpush1.xpose.msra.mxu0 %v88
    %122 = vmatprep.subr.mxu0 0.0
    %123 = vmatpush1.xpose.msra.mxu0 0.0
    %124 = vmatprep.subr.mxu0 0.0
    %125 = vmatpush1.xpose.msra.mxu0 0.0
    %126 = vmatprep.subr.mxu0 0.0
    %127 = vmatpush1.xpose.msra.mxu0 0.0
    %128 = vmatprep.subr.mxu0 0.0
    %129 = vmatpush1.xpose.msra.mxu0 0.0
    %130 = vmatprep.subr.mxu0 0.0
    %131 = vmatpush1.xpose.msra.mxu0 0.0
    %132 = vmatprep.subr.mxu0 0.0
    %133 = vmatpush1.xpose.msra.mxu0 0.0
    %134 = vmatprep.subr.mxu0 0.0
    %135 = vmatpush1.xpose.msra.mxu0 0.0
    %136 = vmatprep.subr.mxu0 0.0
    %137 = vmatpush1.xpose.msra.mxu0 0.0
    %138 = vmatprep.subr.mxu0 0.0
    %139 = vmatpush1.xpose.msra.mxu0 0.0
    %140 = vmatprep.subr.mxu0 0.0
    %141 = vmatpush1.xpose.msra.mxu0 0.0
    %142 = vmatprep.subr.mxu0 0.0
    %143 = vmatpush1.xpose.msra.mxu0 0.0
    %144 = vmatprep.subr.mxu0 0.0
    %145 = vmatpush1.xpose.msra.mxu0 0.0
    %146 = vmatprep.subr.mxu0 0.0
    %147 = vmatpush1.xpose.msra.mxu0 0.0
    %148 = vmatprep.subr.mxu0 0.0
    %149 = vmatpush1.xpose.msra.mxu0 0.0
    %150 = vmatprep.subr.mxu0 0.0
    %151 = vmatpush1.xpose.msra.mxu0 0.0
    %152 = vmatprep.subr.mxu0 0.0
    %153 = vmatpush1.xpose.msra.mxu0 0.0
    %154 = vmatprep.mubr.f32.mxu0 0.0
    %155 = vmatmul.mubr.f32.gmra.mrb[0].mxu0 %v40
    %v156 = vpop.f32.mrb[0].mxu0
    %v157 = vadd.f32 0.0, %v156
    %v158 = vpop.f32.mrb[0].mxu0
    %159 = vdwg.mxu0
    %v160 = vadd.f32 %v37, %v157
    %161 = vst [vmem:[#allocation2] sm:$0xff] %v160
    // Predicated region
    $region18: #{linear_forward.1} parent=1 // pred_check
      %p162 = pneg %p15
    $region19: #{linear_forward.1} parent=1 // pred_check_branch
      %164 = sbr.rel (%p162) target = $region21
    $region20: #{linear_forward.1} parent=1 // pred_region
      %v165 = vld [vmem:[#allocation2] sm:$0xff]
      %v166 = vld [vmem:[%s2] sm:$0x1]
      %v168 = vlaneseq
      %v169 = vshrl.u32 %v168, 7
      %v170 = vsub.s32 0, %v169
      %v171 = vrot.slane %v166, %v170
      %v173 = vadd.f32 %v165, %v171
      %174 = vst [vmem:[#allocation2] sm:$0xff] %v173
    $region21: #{linear_forward.1} parent=1 // pred_fallthru
      _
    // Predicated region
    $region22: #{linear_forward.1} parent=1 // pred_check
      _
    $region23: #{linear_forward.1} parent=1 // pred_check_branch
      %176 = sbr.rel (0) target = $region25
    $region24: #{linear_forward.1} parent=1 // pred_region
      %s178 = ssub.s32 128, 128
      %179 = vsyncadd [#allocation3], %s178
      %s181 = sshll.u32 [#allocation2], 4
      %s182 = int_to_ptr.vmem [resolvable:$true] %s181
      %184 = dma.vmem_to_hbm [thread:$0]  %s182, 128, %s3, [#allocation3]
    $region25: #{linear_forward.1} parent=1 // pred_fallthru
      _
    // Predicated region
    $region26: #{linear_forward.1} parent=1 // pred_check
      _
    $region27: #{linear_forward.1} parent=1 // pred_check_branch
      %186 = sbr.rel (0) target = $region29
    $region28: #{linear_forward.1} parent=1 // pred_region
      %187 = dma.done [#allocation3], 128
    $region29: #{linear_forward.1} parent=1 // pred_fallthru
      _
    %188 = vsyncpa [#allocation3], 1

</llo_original>
